<compile_context>
chip_gen: v6e
topology: v6e:2x2x1
jax: 0.10.0
libtpu: 0.0.40
codegen_flags: <defaults>
</compile_context>

<pallas_src>
import jax
import jax.numpy as jnp
from jax import lax
from jax.experimental import pallas as pl
from jax.experimental.pallas import tpu as pltpu


def attn_linear_kernel(x_ref, h_ref, w_ref, bw_ref, v_ref, bv_ref, o_ref):
    # x_ref : [1, TS, In]   streamed (batch b, seq-tile s) block of `input`
    # h_ref : [1, 1,  St]   hidden row for batch b (re-fetched once per b)
    # w_ref : [inner, F]    W in PyTorch [out, in] layout (resident)
    # bw_ref: [inner, 1]    W bias as a column (resident)
    # v_ref : [inner, 1]    v row as a column (resident)
    # bv_ref: [1, 1]        v bias (resident)
    # o_ref : [1, 1, TS]    lane-dense output block
    ts = x_ref.shape[1]
    st = h_ref.shape[2]

    x = x_ref[0]                                          # [TS, In]
    hb = jnp.broadcast_to(h_ref[0], (ts, st))             # [TS, St] sublane bcast
    xh = jnp.concatenate([x, hb], axis=-1)                # [TS, F]  fused features

    # Single MXU pass: s_T = W @ xh^T  (contract feature axis of both) -> [inner, TS]
    s_t = lax.dot_general(
        w_ref[...], xh,
        dimension_numbers=(((1,), (1,)), ((), ())),
        preferred_element_type=jnp.float32,
    )
    s_t = s_t + bw_ref[...]                               # + bW, broadcast over lanes

    # v-projection on VPU (mul) + XLU (sublane reduce) instead of an N=1 matmul.
    z = jnp.sum(s_t * v_ref[...], axis=0, keepdims=True) + bv_ref[...]   # [1, TS]

    o_ref[0] = jnp.maximum(z, 0.0).astype(o_ref.dtype)


def attn_linear_forward(x, h, W, bW, v, bv):
    """x: [B, S, input_size], h: [B, 1, state_size].
    W: [inner, input_size+state_size], bW: [inner]   (PyTorch nn.Linear layout)
    v: [1, inner],                      bv: [1]
    Returns [B, S, 1] float32.
    """
    B, S, In = x.shape
    St = h.shape[2]
    inner, F = W.shape
    assert F == In + St and h.shape == (B, 1, St)

    # Sequence tile on the lane axis: 128 if it divides S, else one full tile.
    TS = 128 if S % 128 == 0 else S
    nS = S // TS

    # Free unit-dim reshapes only -- no transposes, W stays in [out, in] layout.
    bw_col = bW.reshape(inner, 1)
    v_col = v.reshape(inner, 1)
    bv_s = bv.reshape(1, 1)

    out = pl.pallas_call(
        attn_linear_kernel,
        out_shape=jax.ShapeDtypeStruct((B, 1, S), jnp.float32),
        grid_spec=pltpu.PrefetchScalarGridSpec(
            num_scalar_prefetch=0,
            grid=(B, nS),
            in_specs=[
                pl.BlockSpec((1, TS, In), lambda b, s: (b, s, 0)),   # x (streamed)
                pl.BlockSpec((1, 1, St), lambda b, s: (b, 0, 0)),    # hidden
                pl.BlockSpec((inner, F), lambda b, s: (0, 0)),       # W (resident)
                pl.BlockSpec((inner, 1), lambda b, s: (0, 0)),       # bW (resident)
                pl.BlockSpec((inner, 1), lambda b, s: (0, 0)),       # v  (resident)
                pl.BlockSpec((1, 1), lambda b, s: (0, 0)),           # bv (resident)
            ],
            out_specs=pl.BlockSpec((1, 1, TS), lambda b, s: (b, 0, s)),
        ),
        compiler_params=pltpu.CompilerParams(
            dimension_semantics=("parallel", "parallel")),
    )(x, h, W, bw_col, v_col, bv_s)

    # [B, 1, S] -> [B, S, 1] is a free reshape (same linear order).
    return out.reshape(B, S, 1)


def reference_forward(x, h, W, bW, v, bv):
    # Pure-JAX reference matching the PyTorch semantics exactly.
    B, S, _ = x.shape
    expanded = jnp.broadcast_to(h, (B, S, h.shape[2]))
    cat = jnp.concatenate([x, expanded], axis=2)
    s = cat @ W.T + bW
    return jnp.maximum(s @ v.T + bv, 0.0)


if __name__ == "__main__":
    batch = 2
    seq = 256          # -> two 128-wide lane tiles per batch element
    input_size = 32
    state_size = 16
    inner_size = 10

    key = jax.random.PRNGKey(0)
    kx, kh, kW, kbW, kv, kbv = jax.random.split(key, 6)

    # Parameters in PyTorch nn.Linear layout ([out_features, in_features] + bias).
    F = input_size + state_size
    W = jax.random.normal(kW, (inner_size, F), dtype=jnp.float32) * 0.1
    bW = jax.random.normal(kbW, (inner_size,), dtype=jnp.float32) * 0.1
    v = jax.random.normal(kv, (1, inner_size), dtype=jnp.float32) * 0.1
    bv = jax.random.normal(kbv, (1,), dtype=jnp.float32) * 0.1

    x = jax.random.normal(kx, (batch, seq, input_size), dtype=jnp.float32)
    h = jax.random.normal(kh, (batch, 1, state_size), dtype=jnp.float32)

    out = attn_linear_forward(x, h, W, bW, v, bv)
    jax.block_until_ready(out)

    ref = reference_forward(x, h, W, bW, v, bv)
    assert out.shape == (batch, seq, 1)
    assert jnp.allclose(out, ref, atol=1e-5, rtol=1e-5), (out, ref)

    print("KERNEL_OK")
</pallas_src>

<mosaic_0001>
module attributes {stable_mosaic.version = 11 : i64} {
  func.func @attn_linear_kernel(%arg0: i32, %arg1: i32, %arg2: memref<1x128x32xf32, #tpu.memory_space<vmem>>, %arg3: memref<1x1x16xf32, #tpu.memory_space<vmem>>, %arg4: memref<10x48xf32, #tpu.memory_space<vmem>>, %arg5: memref<10x1xf32, #tpu.memory_space<vmem>>, %arg6: memref<10x1xf32, #tpu.memory_space<vmem>>, %arg7: memref<1x1xf32, #tpu.memory_space<vmem>>, %arg8: memref<1x1x128xf32, #tpu.memory_space<vmem>>) attributes {dimension_semantics = [#tpu.dimension_semantics<parallel>, #tpu.dimension_semantics<parallel>], iteration_bounds = array<i64: 2, 2>, scalar_prefetch = 0 : i64, scratch_operands = 0 : i64, tpu.core_type = #tpu.core_type<tc>, window_params = [{transform_indices = @transform_0, window_bounds = array<i64: 1, 128, 32>}, {transform_indices = @transform_1, window_bounds = array<i64: 1, 1, 16>}, {pipeline_mode = #tpu.pipeline_mode<synchronous>, transform_indices = @transform_2, window_bounds = array<i64: 10, 48>}, {pipeline_mode = #tpu.pipeline_mode<synchronous>, transform_indices = @transform_3, window_bounds = array<i64: 10, 1>}, {pipeline_mode = #tpu.pipeline_mode<synchronous>, transform_indices = @transform_4, window_bounds = array<i64: 10, 1>}, {pipeline_mode = #tpu.pipeline_mode<synchronous>, transform_indices = @transform_5, window_bounds = array<i64: 1, 1>}, {transform_indices = @transform_6, window_bounds = array<i64: 1, 1, 128>}]} {
    %c0 = arith.constant 0 : index
    %c0_0 = arith.constant 0 : index
    %c0_1 = arith.constant 0 : index
    %0 = vector.load %arg2[%c0, %c0_0, %c0_1] : memref<1x128x32xf32, #tpu.memory_space<vmem>>, vector<1x128x32xf32>
    %1 = vector.shape_cast %0 : vector<1x128x32xf32> to vector<128x32xf32>
    %c0_2 = arith.constant 0 : index
    %c0_3 = arith.constant 0 : index
    %c0_4 = arith.constant 0 : index
    %2 = vector.load %arg3[%c0_2, %c0_3, %c0_4] : memref<1x1x16xf32, #tpu.memory_space<vmem>>, vector<1x1x16xf32>
    %3 = vector.shape_cast %2 : vector<1x1x16xf32> to vector<1x16xf32>
    %4 = vector.shape_cast %3 : vector<1x16xf32> to vector<1x16xf32>
    %5 = vector.broadcast %4 : vector<1x16xf32> to vector<128x16xf32>
    %6 = tpu.concatenate %1, %5 in 1 : vector<128x32xf32>, vector<128x16xf32> -> vector<128x48xf32>
    %c0_5 = arith.constant 0 : index
    %c0_6 = arith.constant 0 : index
    %7 = vector.load %arg4[%c0_5, %c0_6] : memref<10x48xf32, #tpu.memory_space<vmem>>, vector<10x48xf32>
    %cst = arith.constant dense<0.000000e+00> : vector<10x128xf32>
    %8 = tpu.matmul %7, %6, %cst {dimension_numbers = #tpu.dot_dimension_numbers<[1], [1], [0], [0], [0, 0, 1, 0], [], []>} : vector<10x48xf32>, vector<128x48xf32>, vector<10x128xf32> -> vector<10x128xf32>
    %c0_7 = arith.constant 0 : index
    %c0_8 = arith.constant 0 : index
    %9 = vector.load %arg5[%c0_7, %c0_8] : memref<10x1xf32, #tpu.memory_space<vmem>>, vector<10x1xf32>
    %10 = vector.broadcast %9 : vector<10x1xf32> to vector<10x128xf32>
    %11 = arith.addf %8, %10 : vector<10x128xf32>
    %c0_9 = arith.constant 0 : index
    %c0_10 = arith.constant 0 : index
    %12 = vector.load %arg6[%c0_9, %c0_10] : memref<10x1xf32, #tpu.memory_space<vmem>>, vector<10x1xf32>
    %13 = vector.broadcast %12 : vector<10x1xf32> to vector<10x128xf32>
    %14 = arith.mulf %11, %13 : vector<10x128xf32>
    %cst_11 = arith.constant dense<0.000000e+00> : vector<128xf32>
    %15 = vector.multi_reduction <add>, %14, %cst_11 [0] : vector<10x128xf32> to vector<128xf32>
    %16 = vector.shape_cast %15 : vector<128xf32> to vector<1x128xf32>
    %c0_12 = arith.constant 0 : index
    %c0_13 = arith.constant 0 : index
    %17 = vector.load %arg7[%c0_12, %c0_13] : memref<1x1xf32, #tpu.memory_space<vmem>>, vector<1x1xf32>
    %18 = vector.broadcast %17 : vector<1x1xf32> to vector<1x128xf32>
    %19 = arith.addf %16, %18 : vector<1x128xf32>
    %cst_14 = arith.constant 0.000000e+00 : f32
    %20 = vector.broadcast %cst_14 : f32 to vector<1x128xf32>
    %21 = arith.maximumf %19, %20 : vector<1x128xf32>
    %c0_15 = arith.constant 0 : index
    %c0_16 = arith.constant 0 : index
    %c0_17 = arith.constant 0 : index
    %22 = vector.load %arg8[%c0_15, %c0_16, %c0_17] : memref<1x1x128xf32, #tpu.memory_space<vmem>>, vector<1x1x128xf32>
    %23 = vector.shape_cast %22 : vector<1x1x128xf32> to vector<1x128xf32>
    %24 = vector.shape_cast %21 : vector<1x128xf32> to vector<1x1x128xf32>
    tpu.vector_store %arg8[%c0_15, %c0_16, %c0_17], %24 {strides = array<i32>} : memref<1x1x128xf32, #tpu.memory_space<vmem>>, vector<1x1x128xf32>,
    return
  }
  func.func @transform_0(%arg0: i32, %arg1: i32) -> (i32, i32, i32) {
    %c0_i32 = arith.constant 0 : i32
    %c0_i32_0 = arith.constant 0 : i32
    return %arg0, %arg1, %c0_i32 : i32, i32, i32
  }
  func.func @transform_1(%arg0: i32, %arg1: i32) -> (i32, i32, i32) {
    %c0_i32 = arith.constant 0 : i32
    %c0_i32_0 = arith.constant 0 : i32
    %c0_i32_1 = arith.constant 0 : i32
    return %arg0, %c0_i32, %c0_i32_0 : i32, i32, i32
  }
  func.func @transform_2(%arg0: i32, %arg1: i32) -> (i32, i32) {
    %c0_i32 = arith.constant 0 : i32
    %c0_i32_0 = arith.constant 0 : i32
    %c0_i32_1 = arith.constant 0 : i32
    return %c0_i32, %c0_i32_0 : i32, i32
  }
  func.func @transform_3(%arg0: i32, %arg1: i32) -> (i32, i32) {
    %c0_i32 = arith.constant 0 : i32
    %c0_i32_0 = arith.constant 0 : i32
    %c0_i32_1 = arith.constant 0 : i32
    return %c0_i32, %c0_i32_0 : i32, i32
  }
  func.func @transform_4(%arg0: i32, %arg1: i32) -> (i32, i32) {
    %c0_i32 = arith.constant 0 : i32
    %c0_i32_0 = arith.constant 0 : i32
    %c0_i32_1 = arith.constant 0 : i32
    return %c0_i32, %c0_i32_0 : i32, i32
  }
  func.func @transform_5(%arg0: i32, %arg1: i32) -> (i32, i32) {
    %c0_i32 = arith.constant 0 : i32
    %c0_i32_0 = arith.constant 0 : i32
    %c0_i32_1 = arith.constant 0 : i32
    return %c0_i32, %c0_i32_0 : i32, i32
  }
  func.func @transform_6(%arg0: i32, %arg1: i32) -> (i32, i32, i32) {
    %c0_i32 = arith.constant 0 : i32
    %c0_i32_0 = arith.constant 0 : i32
    return %arg0, %c0_i32, %arg1 : i32, i32, i32
  }
}

</mosaic_0001>

<llo_original>
// kernel: tpu_custom_call.1
$region0: #{tpu_custom_call.1}
  #allocation0 [shape = 'u32[]', space=smem, size = 0x4, offset = 0x4, fixed_abs, tag = 'smem constant byte address 0x4 - core index']
  #allocation1 [shape = 'u32[144,128]{1,0:T(1,128)}', space=vmem, size = 0x12000, scoped, tag = 'internal scratch']
  #allocation2 [shape = 'f32[1,1]{1,0:T(1,128)S(1)}', space=vmem, size = 0x200, scoped, tag = 'scoped memory for tpu_custom_call.1']
  %s0 = inlined_call_operand.vmem [shape: f32[2,256,32], index: 0, kind: input, shape index: {}]
  %s1 = inlined_call_operand.vmem [shape: f32[2,1,16], index: 1, kind: input, shape index: {}]
  %s2 = inlined_call_operand.vmem [shape: f32[10,48], index: 2, kind: input, shape index: {}]
  %s3 = inlined_call_operand.vmem [shape: f32[10,1], index: 3, kind: input, shape index: {}]
  %s4 = inlined_call_operand.vmem [shape: f32[10,1], index: 4, kind: input, shape index: {}]
  %s5 = inlined_call_operand.<no memory space> [shape: f32[1,1], index: 5, kind: input, shape index: {}]
  %s6 = inlined_call_operand.hbm [shape: f32[2,1,256], index: 6, kind: output, shape index: {}]
  %s7 = sld [smem:[#allocation0]]
  $region57: #{tpu_custom_call.1} parent=0
    _
  %s9 = ssub.s32 1, %s7
  %s10 = scalar_select 0, %s9, %s7
  %v11 = vstv %s5
  %12 = vst [vmem:[#allocation2] sm:$0x1] %v11
  $region1: #{tpu_custom_call.1} parent=0
    #allocation3 [shape = 'u8[1024]{0}', space=vmem, size = 0x400, scoped, tag = 'output window, operand 0']
    #allocation4 [shape = 's32[2]{0}', space=sflag, size = 0x8, scoped, tag = 'scoped memory for tpu_custom_call.1']
    %13 = vsyncpa [#allocation4], 0
    %s14 = scalar_lea.sflag [#allocation4], 1
    %15 = vsyncpa %s14, 0
    loop: start=0, step=1, limit=6
    $region2: #{tpu_custom_call.1} parent=1 // loop_pre_header
      _
    $region3: #{tpu_custom_call.1} parent=1 // loop_header
      %s17 = sphi 0, %s21
      %p18 = scmp.ge.s32.totalorder %s17, 6
      %s24 = sphi 0, %s36
      %s25 = sphi 0, %s32
      %s26 = sphi 0, %s24
      %s27 = sphi 0, %s25
      %s28 = sphi 0, %s26
      %s29 = sphi 0, %s27
      %s41 = sphi 0, %s43
      %s44 = sphi 0, %s41
      %s45 = sphi 0, %s44
      %s61 = sphi 0, %s45
      %s67 = sphi 0, %s69
      %s70 = sphi 0, %s67
      %s71 = sphi 0, %s70
      %s87 = sphi 0, %s71
      %s91 = sphi 0, %s91
      %s93 = sphi 0, %s91
      %s94 = sphi 0, %s93
      %s108 = sphi 0, %s94
      %s112 = sphi 0, %s112
      %s114 = sphi 0, %s112
      %s115 = sphi 0, %s114
      %s129 = sphi 0, %s115
      %s133 = sphi 0, %s133
      %s135 = sphi 0, %s133
      %s136 = sphi 0, %s135
      %s150 = sphi 0, %s136
      %s154 = sphi 0, %s154
      %s156 = sphi 0, %s154
      %s157 = sphi 0, %s156
      %s171 = sphi 0, %s157
      %s179 = sphi 0, %s181
      %s182 = sphi 0, %s179
      %s183 = sphi 0, %s182
      %s199 = sphi 0, %s183
    $region4: #{tpu_custom_call.1} parent=1 // loop_header_branch
      %20 = sbr.rel (%p18) target = $region8
    $region5: #{tpu_custom_call.1} parent=1 // loop_body
      %s22 = ssub.s32 %s17, 1
      %s23 = ssub.s32 %s17, 2
      %s30 = sadd.s32 1, %s25
      %p31 = scmp.ge.s32.totalorder %s30, 2
      %s32 = scalar_select %p31, 0, %s30
      %s33 = sadd.s32 1, %s24
      %s34 = scalar_select %p31, %s33, %s24
      %p35 = scmp.ge.s32.totalorder %s34, 2
      %s36 = scalar_select %p35, 0, %s34
      %s37 = ssub.s32 %s24, %s36
      %s38 = ssub.s32 %s25, %s32
      %s39 = sor.u32 %s37, %s38
      %p40 = scmp.eq.s32.totalorder %s39, 0
      %s42 = sadd.s32 %s41, 1
      %s43 = scalar_select %p40, %s41, %s42
      %p46 = pneg %p40
      %p47 = scmp.eq.s32.totalorder %s17, 3
      %p48 = por %p46, %p47
      %p49 = scmp.ne.s32.totalorder %s41, %s44
      %p50 = scmp.eq.s32.totalorder %s17, 0
      %p51 = por %p49, %p50
      %p52 = scmp.ne.s32.totalorder %s41, %s44
      %p53 = scmp.eq.s32.totalorder %s22, 3
      %p54 = por %p52, %p53
      %p55 = scmp.ne.s32.totalorder %s44, %s45
      %p56 = scmp.eq.s32.totalorder %s22, 0
      %p57 = por %p55, %p56
      %p58 = scmp.ne.s32.totalorder %s44, %s45
      %p59 = scmp.eq.s32.totalorder %s23, 3
      %p60 = por %p58, %p59
      %p62 = scmp.ne.s32.totalorder %s45, %s61
      %p63 = scmp.eq.s32.totalorder %s23, 0
      %p64 = por %p62, %p63
      %s65 = ssub.s32 %s24, %s36
      %p66 = scmp.eq.s32.totalorder %s65, 0
      %s68 = sadd.s32 %s67, 1
      %s69 = scalar_select %p66, %s67, %s68
      %p72 = pneg %p66
      %p73 = scmp.eq.s32.totalorder %s17, 3
      %p74 = por %p72, %p73
      %p75 = scmp.ne.s32.totalorder %s67, %s70
      %p76 = scmp.eq.s32.totalorder %s17, 0
      %p77 = por %p75, %p76
      %p78 = scmp.ne.s32.totalorder %s67, %s70
      %p79 = scmp.eq.s32.totalorder %s22, 3
      %p80 = por %p78, %p79
      %p81 = scmp.ne.s32.totalorder %s70, %s71
      %p82 = scmp.eq.s32.totalorder %s22, 0
      %p83 = por %p81, %p82
      %p84 = scmp.ne.s32.totalorder %s70, %s71
      %p85 = scmp.eq.s32.totalorder %s23, 3
      %p86 = por %p84, %p85
      %p88 = scmp.ne.s32.totalorder %s71, %s87
      %p89 = scmp.eq.s32.totalorder %s23, 0
      %p90 = por %p88, %p89
      %s92 = sadd.s32 %s91, 1
      %p95 = scmp.eq.s32.totalorder %s17, 3
      %p96 = scmp.ne.s32.totalorder %s91, %s93
      %p97 = scmp.eq.s32.totalorder %s17, 0
      %p98 = por %p96, %p97
      %p99 = scmp.ne.s32.totalorder %s91, %s93
      %p100 = scmp.eq.s32.totalorder %s22, 3
      %p101 = por %p99, %p100
      %p102 = scmp.ne.s32.totalorder %s93, %s94
      %p103 = scmp.eq.s32.totalorder %s22, 0
      %p104 = por %p102, %p103
      %p105 = scmp.ne.s32.totalorder %s93, %s94
      %p106 = scmp.eq.s32.totalorder %s23, 3
      %p107 = por %p105, %p106
      %p109 = scmp.ne.s32.totalorder %s94, %s108
      %p110 = scmp.eq.s32.totalorder %s23, 0
      %p111 = por %p109, %p110
      %s113 = sadd.s32 %s112, 1
      %p116 = scmp.eq.s32.totalorder %s17, 3
      %p117 = scmp.ne.s32.totalorder %s112, %s114
      %p118 = scmp.eq.s32.totalorder %s17, 0
      %p119 = por %p117, %p118
      %p120 = scmp.ne.s32.totalorder %s112, %s114
      %p121 = scmp.eq.s32.totalorder %s22, 3
      %p122 = por %p120, %p121
      %p123 = scmp.ne.s32.totalorder %s114, %s115
      %p124 = scmp.eq.s32.totalorder %s22, 0
      %p125 = por %p123, %p124
      %p126 = scmp.ne.s32.totalorder %s114, %s115
      %p127 = scmp.eq.s32.totalorder %s23, 3
      %p128 = por %p126, %p127
      %p130 = scmp.ne.s32.totalorder %s115, %s129
      %p131 = scmp.eq.s32.totalorder %s23, 0
      %p132 = por %p130, %p131
      %s134 = sadd.s32 %s133, 1
      %p137 = scmp.eq.s32.totalorder %s17, 3
      %p138 = scmp.ne.s32.totalorder %s133, %s135
      %p139 = scmp.eq.s32.totalorder %s17, 0
      %p140 = por %p138, %p139
      %p141 = scmp.ne.s32.totalorder %s133, %s135
      %p142 = scmp.eq.s32.totalorder %s22, 3
      %p143 = por %p141, %p142
      %p144 = scmp.ne.s32.totalorder %s135, %s136
      %p145 = scmp.eq.s32.totalorder %s22, 0
      %p146 = por %p144, %p145
      %p147 = scmp.ne.s32.totalorder %s135, %s136
      %p148 = scmp.eq.s32.totalorder %s23, 3
      %p149 = por %p147, %p148
      %p151 = scmp.ne.s32.totalorder %s136, %s150
      %p152 = scmp.eq.s32.totalorder %s23, 0
      %p153 = por %p151, %p152
      %s155 = sadd.s32 %s154, 1
      %p158 = scmp.eq.s32.totalorder %s17, 3
      %p159 = scmp.ne.s32.totalorder %s154, %s156
      %p160 = scmp.eq.s32.totalorder %s17, 0
      %p161 = por %p159, %p160
      %p162 = scmp.ne.s32.totalorder %s154, %s156
      %p163 = scmp.eq.s32.totalorder %s22, 3
      %p164 = por %p162, %p163
      %p165 = scmp.ne.s32.totalorder %s156, %s157
      %p166 = scmp.eq.s32.totalorder %s22, 0
      %p167 = por %p165, %p166
      %p168 = scmp.ne.s32.totalorder %s156, %s157
      %p169 = scmp.eq.s32.totalorder %s23, 3
      %p170 = por %p168, %p169
      %p172 = scmp.ne.s32.totalorder %s157, %s171
      %p173 = scmp.eq.s32.totalorder %s23, 0
      %p174 = por %p172, %p173
      %s175 = ssub.s32 %s24, %s36
      %s176 = ssub.s32 %s25, %s32
      %s177 = sor.u32 %s175, %s176
      %p178 = scmp.eq.s32.totalorder %s177, 0
      %s180 = sadd.s32 %s179, 1
      %s181 = scalar_select %p178, %s179, %s180
      %p184 = pneg %p178
      %p185 = scmp.eq.s32.totalorder %s17, 3
      %p186 = por %p184, %p185
      %p187 = scmp.ne.s32.totalorder %s179, %s182
      %p188 = scmp.eq.s32.totalorder %s17, 0
      %p189 = por %p187, %p188
      %p190 = scmp.ne.s32.totalorder %s179, %s182
      %p191 = scmp.eq.s32.totalorder %s22, 3
      %p192 = por %p190, %p191
      %p193 = scmp.ne.s32.totalorder %s182, %s183
      %p194 = scmp.eq.s32.totalorder %s22, 0
      %p195 = por %p193, %p194
      %p196 = scmp.ne.s32.totalorder %s182, %s183
      %p197 = scmp.eq.s32.totalorder %s23, 3
      %p198 = por %p196, %p197
      %p200 = scmp.ne.s32.totalorder %s183, %s199
      %p201 = scmp.eq.s32.totalorder %s23, 0
      %p202 = por %p200, %p201
      %p203 = scmp.le.s32.totalorder 1, %s17
      %p204 = scmp.lt.s32.totalorder %s17, 5
      %p205 = pnand %p203, %p204
      %p206 = pneg %p205
      // Predicated region
      $region9: #{tpu_custom_call.1} parent=5 // pred_check
        _
      $region10: #{tpu_custom_call.1} parent=5 // pred_check_branch
        %208 = sbr.rel (%p205) target = $region12
      $region11: #{tpu_custom_call.1} parent=5 // pred_region
        %s209 = ssub.s32 %s17, 1
        // Predicated region
        $region13: #{tpu_custom_call.1} parent=11 // pred_check
          %p210 = pneg %p104
        $region14: #{tpu_custom_call.1} parent=11 // pred_check_branch
          %212 = sbr.rel (%p210) target = $region16
        $region15: #{tpu_custom_call.1} parent=11 // pred_region
          _
        $region16: #{tpu_custom_call.1} parent=11 // pred_fallthru
          _
        // Predicated region
        $region17: #{tpu_custom_call.1} parent=11 // pred_check
          %p213 = pneg %p125
        $region18: #{tpu_custom_call.1} parent=11 // pred_check_branch
          %215 = sbr.rel (%p213) target = $region20
        $region19: #{tpu_custom_call.1} parent=11 // pred_region
          _
        $region20: #{tpu_custom_call.1} parent=11 // pred_fallthru
          _
        // Predicated region
        $region21: #{tpu_custom_call.1} parent=11 // pred_check
          %p216 = pneg %p146
        $region22: #{tpu_custom_call.1} parent=11 // pred_check_branch
          %218 = sbr.rel (%p216) target = $region24
        $region23: #{tpu_custom_call.1} parent=11 // pred_region
          _
        $region24: #{tpu_custom_call.1} parent=11 // pred_fallthru
          _
        // Predicated region
        $region25: #{tpu_custom_call.1} parent=11 // pred_check
          %p219 = pneg %p167
        $region26: #{tpu_custom_call.1} parent=11 // pred_check_branch
          %221 = sbr.rel (%p219) target = $region28
        $region27: #{tpu_custom_call.1} parent=11 // pred_region
          _
        $region28: #{tpu_custom_call.1} parent=11 // pred_fallthru
          _
      $region12: #{tpu_custom_call.1} parent=5 // pred_fallthru
        _
      %p222 = scmp.lt.s32.totalorder %s17, 4
      // Predicated region
      $region29: #{tpu_custom_call.1} parent=5 // pred_check
        %p223 = pneg %p222
      $region30: #{tpu_custom_call.1} parent=5 // pred_check_branch
        %225 = sbr.rel (%p223) target = $region32
      $region31: #{tpu_custom_call.1} parent=5 // pred_region
        // Predicated region
        $region33: #{tpu_custom_call.1} parent=31 // pred_check
          %p226 = pneg %p51
        $region34: #{tpu_custom_call.1} parent=31 // pred_check_branch
          %228 = sbr.rel (%p226) target = $region36
        $region35: #{tpu_custom_call.1} parent=31 // pred_region
          %s229 = smul.u32 16, %s25
          %p230 = scmp.lt.s32.totalorder %s24, 1
          %s231 = scalar_select %p230, %s24, 1
          %p232 = scmp.lt.s32.totalorder %s229, 31
          %s233 = scalar_select %p232, %s229, 31
          %s234 = smul.addr %s231, 32
          %s235 = sadd.s32 %s233, %s234
          %s236 = smul.addr %s235, 8
          %s237 = scalar_lea.vmem %s0, %s236
          %s238 = smul.u32 16, %s25
        $region36: #{tpu_custom_call.1} parent=31 // pred_fallthru
          _
        // Predicated region
        $region37: #{tpu_custom_call.1} parent=31 // pred_check
          %p239 = pneg %p77
        $region38: #{tpu_custom_call.1} parent=31 // pred_check_branch
          %241 = sbr.rel (%p239) target = $region40
        $region39: #{tpu_custom_call.1} parent=31 // pred_region
          %p242 = scmp.lt.s32.totalorder %s24, 1
          %s243 = scalar_select %p242, %s24, 1
          %s244 = scalar_lea.vmem %s1, %s243
        $region40: #{tpu_custom_call.1} parent=31 // pred_fallthru
          _
      $region32: #{tpu_custom_call.1} parent=5 // pred_fallthru
        _
      %p245 = scmp.le.s32.totalorder 1, %s17
      %p246 = scmp.lt.s32.totalorder %s17, 5
      %p247 = pnand %p245, %p246
      %p248 = pneg %p247
      // Predicated region
      $region41: #{tpu_custom_call.1} parent=5 // pred_check
        _
      $region42: #{tpu_custom_call.1} parent=5 // pred_check_branch
        %250 = sbr.rel (%p247) target = $region44
      $region43: #{tpu_custom_call.1} parent=5 // pred_region
        %s251 = ssub.s32 %s17, 1
        %s252 = smul.u32 16, %s27
        %p253 = scmp.lt.s32.totalorder %s26, 1
        %s254 = scalar_select %p253, %s26, 1
        %p255 = scmp.lt.s32.totalorder %s252, 31
        %s256 = scalar_select %p255, %s252, 31
        %s257 = smul.addr %s254, 32
        %s258 = sadd.s32 %s256, %s257
        %s259 = smul.addr %s258, 8
        %s260 = scalar_lea.vmem %s0, %s259
        %p261 = pneg %p57
        %p262 = pneg %p54
        %p263 = scmp.lt.s32.totalorder %s26, 1
        %s264 = scalar_select %p263, %s26, 1
        %s265 = scalar_lea.vmem %s1, %s264
        %p266 = pneg %p83
        %p267 = pneg %p80
        %p268 = pneg %p104
        %p269 = pneg %p101
        %p270 = pneg %p125
        %p271 = pneg %p122
        %p272 = pneg %p146
        %p273 = pneg %p143
        %p274 = pneg %p167
        %p275 = pneg %p164
        %p276 = pneg %p195
        %p277 = pneg %p192
        %s278 = sand.u32 %s182, 1
        %s279 = scalar_lea.sflag [#allocation4], %s278
        %s280 = sand.u32 %s182, 1
        %s281 = scalar_lea.vmem [#allocation3], %s280
        %s282 = smul.u32 16, %s27
        %p283 = scmp.lt.s32.totalorder %s26, 1
        %s284 = scalar_select %p283, %s26, 1
        %p285 = scmp.lt.s32.totalorder %s282, 31
        %s286 = scalar_select %p285, %s282, 31
        %s287 = smul.addr %s284, 32
        %s288 = sadd.s32 %s286, %s287
        %s289 = smul.addr %s288, 8
        %s290 = scalar_lea.vmem %s0, %s289
        %s291 = smul.u32 16, %s27
        %p292 = scmp.lt.s32.totalorder %s26, 1
        %s293 = scalar_select %p292, %s26, 1
        %s294 = scalar_lea.vmem %s1, %s293
        %v295 = vld [vmem:[%s290] sm:$0xff]
        %v296 = vld [vmem:[%s290 + $0x8] sm:$0xff]
        %v297 = vld [vmem:[%s290 + $0x10] sm:$0xff]
        %v298 = vld [vmem:[%s290 + $0x18] sm:$0xff]
        %v299 = vld [vmem:[%s290 + $0x20] sm:$0xff]
        %v300 = vld [vmem:[%s290 + $0x28] sm:$0xff]
        %v301 = vld [vmem:[%s290 + $0x30] sm:$0xff]
        %v302 = vld [vmem:[%s290 + $0x38] sm:$0xff]
        %v303 = vld [vmem:[%s290 + $0x40] sm:$0xff]
        %v304 = vld [vmem:[%s290 + $0x48] sm:$0xff]
        %v305 = vld [vmem:[%s290 + $0x50] sm:$0xff]
        %v306 = vld [vmem:[%s290 + $0x58] sm:$0xff]
        %v307 = vld [vmem:[%s290 + $0x60] sm:$0xff]
        %v308 = vld [vmem:[%s290 + $0x68] sm:$0xff]
        %v309 = vld [vmem:[%s290 + $0x70] sm:$0xff]
        %v310 = vld [vmem:[%s290 + $0x78] sm:$0xff]
        %v311 = vld [vmem:[%s294] sm:$0x1]
        %v313 = vlaneseq
        %v314 = vshrl.u32 %v313, 7
        %v315 = vsub.s32 0, %v314
        %v316 = vrot.slane %v311, %v315
        %317 = vrot.lane.b32.xlu0 %v316, 32
        %v318 = vpop.permute.xlu0 %317
        %vm320 = vcmask 261120
        %v321 = vsel %vm320, %v295, %v318
        %v322 = vsel %vm320, %v296, %v318
        %v323 = vsel %vm320, %v297, %v318
        %v324 = vsel %vm320, %v298, %v318
        %v325 = vsel %vm320, %v299, %v318
        %v326 = vsel %vm320, %v300, %v318
        %v327 = vsel %vm320, %v301, %v318
        %v328 = vsel %vm320, %v302, %v318
        %v329 = vsel %vm320, %v303, %v318
        %v330 = vsel %vm320, %v304, %v318
        %v331 = vsel %vm320, %v305, %v318
        %v332 = vsel %vm320, %v306, %v318
        %v333 = vsel %vm320, %v307, %v318
        %v334 = vsel %vm320, %v308, %v318
        %v335 = vsel %vm320, %v309, %v318
        %v336 = vsel %vm320, %v310, %v318
        %v337 = vld [vmem:[%s2] sm:$0xff]
        %v338 = vld [vmem:[%s2 + $0x8] sm:$0x3]
        %v339 = vld [vmem:[%s3] sm:$0xff]
        %v340 = vld [vmem:[%s3 + $0x8] sm:$0x3]
        %342 = vset.pattern.permute.xlu0 0
        %343 = vperm.xlu0 %342, %v339
        %v344 = vpop.permute.xlu0 %343
        %347 = vset.pattern.permute.xlu0 0
        %348 = vperm.xlu0 %347, %v340
        %v349 = vpop.permute.xlu0 %348
        %vm351 = vcmask 392192
        %v353 = vsel %vm351, %v337, 0
        %v356 = vsel %vm351, %v338, 0
        %v359 = vsel %vm351, %v321, 0
        %v362 = vsel %vm351, %v322, 0
        %v365 = vsel %vm351, %v323, 0
        %v368 = vsel %vm351, %v324, 0
        %v371 = vsel %vm351, %v325, 0
        %v374 = vsel %vm351, %v326, 0
        %v377 = vsel %vm351, %v327, 0
        %v380 = vsel %vm351, %v328, 0
        %v383 = vsel %vm351, %v329, 0
        %v386 = vsel %vm351, %v330, 0
        %v389 = vsel %vm351, %v331, 0
        %v392 = vsel %vm351, %v332, 0
        %v395 = vsel %vm351, %v333, 0
        %v398 = vsel %vm351, %v334, 0
        %v401 = vsel %vm351, %v335, 0
        %v404 = vsel %vm351, %v336, 0
        %406 = vmatprep.subr.mxu0 0.0
        %407 = vmatpush1.xpose.msra.mxu0 %v404
        %408 = vmatprep.subr.mxu0 0.0
        %409 = vmatpush1.xpose.msra.mxu0 %v401
        %410 = vmatprep.subr.mxu0 0.0
        %411 = vmatpush1.xpose.msra.mxu0 %v398
        %412 = vmatprep.subr.mxu0 0.0
        %413 = vmatpush1.xpose.msra.mxu0 %v395
        %414 = vmatprep.subr.mxu0 0.0
        %415 = vmatpush1.xpose.msra.mxu0 %v392
        %416 = vmatprep.subr.mxu0 0.0
        %417 = vmatpush1.xpose.msra.mxu0 %v389
        %418 = vmatprep.subr.mxu0 0.0
        %419 = vmatpush1.xpose.msra.mxu0 %v386
        %420 = vmatprep.subr.mxu0 0.0
        %421 = vmatpush1.xpose.msra.mxu0 %v383
        %422 = vmatprep.subr.mxu0 0.0
        %423 = vmatpush1.xpose.msra.mxu0 %v380
        %424 = vmatprep.subr.mxu0 0.0
        %425 = vmatpush1.xpose.msra.mxu0 %v377
        %426 = vmatprep.subr.mxu0 0.0
        %427 = vmatpush1.xpose.msra.mxu0 %v374
        %428 = vmatprep.subr.mxu0 0.0
        %429 = vmatpush1.xpose.msra.mxu0 %v371
        %430 = vmatprep.subr.mxu0 0.0
        %431 = vmatpush1.xpose.msra.mxu0 %v368
        %432 = vmatprep.subr.mxu0 0.0
        %433 = vmatpush1.xpose.msra.mxu0 %v365
        %434 = vmatprep.subr.mxu0 0.0
        %435 = vmatpush1.xpose.msra.mxu0 %v362
        %436 = vmatprep.subr.mxu0 0.0
        %437 = vmatpush1.xpose.msra.mxu0 %v359
        %438 = vmatprep.subr.mxu0 0.0
        %439 = vmatpush2.xpose.msra.mxu0 0.0
        %440 = vmatprep.subr.mxu0 0.0
        %441 = vmatpush2.xpose.msra.mxu0 0.0
        %442 = vmatprep.subr.mxu0 0.0
        %443 = vmatpush2.xpose.msra.mxu0 0.0
        %444 = vmatprep.subr.mxu0 0.0
        %445 = vmatpush2.xpose.msra.mxu0 0.0
        %446 = vmatprep.subr.mxu0 0.0
        %447 = vmatpush2.xpose.msra.mxu0 0.0
        %448 = vmatprep.subr.mxu0 0.0
        %449 = vmatpush2.xpose.msra.mxu0 0.0
        %450 = vmatprep.subr.mxu0 0.0
        %451 = vmatpush2.xpose.msra.mxu0 0.0
        %452 = vmatprep.subr.mxu0 0.0
        %453 = vmatpush2.xpose.msra.mxu0 0.0
        %454 = vmatprep.subr.mxu0 0.0
        %455 = vmatpush2.xpose.msra.mxu0 0.0
        %456 = vmatprep.subr.mxu0 0.0
        %457 = vmatpush2.xpose.msra.mxu0 0.0
        %458 = vmatprep.subr.mxu0 0.0
        %459 = vmatpush2.xpose.msra.mxu0 0.0
        %460 = vmatprep.subr.mxu0 0.0
        %461 = vmatpush2.xpose.msra.mxu0 0.0
        %462 = vmatprep.subr.mxu0 0.0
        %463 = vmatpush2.xpose.msra.mxu0 0.0
        %464 = vmatprep.subr.mxu0 0.0
        %465 = vmatpush2.xpose.msra.mxu0 0.0
        %466 = vmatprep.subr.mxu0 0.0
        %467 = vmatpush2.xpose.msra.mxu0 0.0
        %468 = vmatprep.subr.mxu0 0.0
        %469 = vmatpush2.xpose.msra.mxu0 0.0
        %470 = vmatprep.mubr.f32.mxu0 0.0
        %471 = vmatmul.mubr.f32.gmra.mxu0 %v353
        %v472 = vpop.f32.mrf.mxu0
        %v473 = vadd.f32 %v344, %v472
        %v474 = vpop.f32.mrf.mxu0
        %475 = vmatprep.mubr.f32.mxu0 0.0
        %476 = vmatmul.mubr.f32.gmra.mxu0 %v356
        %v477 = vpop.f32.mrf.mxu0
        %v478 = vadd.f32 %v349, %v477
        %v479 = vpop.f32.mrf.mxu0
        %480 = vdwg.mxu0
        %v481 = vld [vmem:[%s4] sm:$0xff]
        %v482 = vld [vmem:[%s4 + $0x8] sm:$0x3]
        %484 = vset.pattern.permute.xlu0 0
        %485 = vperm.xlu0 %484, %v481
        %v486 = vpop.permute.xlu0 %485
        %489 = vset.pattern.permute.xlu0 0
        %490 = vperm.xlu0 %489, %v482
        %v491 = vpop.permute.xlu0 %490
        %v493 = vmul.f32 %v473, %v486
        %v494 = vmul.f32 %v478, %v491
        %vm495 = vcmask 1041408
        %v496 = vsel %vm495, %v494, 0.0
        %v497 = vadd.f32 %v493, %v496
        %v498 = vrot.slane %v497, 4
        %v499 = vadd.f32 %v497, %v498
        %v500 = vrot.slane %v499, 2
        %v501 = vadd.f32 %v499, %v500
        %v502 = vrot.slane %v501, 1
        %v503 = vadd.f32 %v501, %v502
        %v504 = vld [vmem:[#allocation2] sm:$0x1]
        %506 = vset.pattern.permute.xlu0 0
        %507 = vperm.xlu0 %506, %v504
        %v508 = vpop.permute.xlu0 %507
        %v510 = vlaneseq
        %v511 = vshrl.u32 %v510, 7
        %v512 = vsub.s32 0, %v511
        %v513 = vrot.slane %v508, %v512
        %v514 = vadd.f32 %v503, %v513
        %v515 = vmax.f32 %v514, 0.0
        %516 = vst [vmem:[%s281] sm:$0x1] %v515
        %s517 = sand.u32 %s182, 1
        %s518 = scalar_lea.sflag [#allocation4], %s517
        %s519 = sand.u32 %s182, 1
        %s520 = scalar_lea.vmem [#allocation3], %s519
        // Predicated region
        $region45: #{tpu_custom_call.1} parent=43 // pred_check
          %p521 = pneg %p192
        $region46: #{tpu_custom_call.1} parent=43 // pred_check_branch
          %523 = sbr.rel (%p521) target = $region48
        $region47: #{tpu_custom_call.1} parent=43 // pred_region
          %s525 = ssub.s32 16, 16
          %526 = vsyncadd %s518, %s525
          %s527 = smul.addr %s26, 2
          %s528 = sadd.s32 %s27, %s527
          %s529 = smul.addr %s528, 16
          %s530 = scalar_lea.hbm %s6, %s529
          %s532 = sshll.u32 %s520, 4
          %s533 = int_to_ptr.vmem [resolvable:$true] %s532
          %535 = dma.vmem_to_hbm [thread:$0]  %s533, 16, %s530, %s518
        $region48: #{tpu_custom_call.1} parent=43 // pred_fallthru
          _
      $region44: #{tpu_custom_call.1} parent=5 // pred_fallthru
        _
      %p536 = scmp.le.s32.totalorder 2, %s17
      // Predicated region
      $region49: #{tpu_custom_call.1} parent=5 // pred_check
        %p537 = pneg %p536
      $region50: #{tpu_custom_call.1} parent=5 // pred_check_branch
        %539 = sbr.rel (%p537) target = $region52
      $region51: #{tpu_custom_call.1} parent=5 // pred_region
        %s540 = ssub.s32 %s17, 2
        // Predicated region
        $region53: #{tpu_custom_call.1} parent=51 // pred_check
          %p541 = pneg %p198
        $region54: #{tpu_custom_call.1} parent=51 // pred_check_branch
          %543 = sbr.rel (%p541) target = $region56
        $region55: #{tpu_custom_call.1} parent=51 // pred_region
          %s544 = sand.u32 %s183, 1
          %s545 = scalar_lea.sflag [#allocation4], %s544
          %s546 = sand.u32 %s183, 1
          %s547 = scalar_lea.vmem [#allocation3], %s546
          %548 = dma.done %s545, 16
        $region56: #{tpu_custom_call.1} parent=51 // pred_fallthru
          _
      $region52: #{tpu_custom_call.1} parent=5 // pred_fallthru
        _
    $region6: #{tpu_custom_call.1} parent=1 // loop_footer
      %s21 = sadd.s32 1, %s17
    $region7: #{tpu_custom_call.1} parent=1 // loop_footer_branch
      %16 = sbr.rel target = $region3
    $region8: #{tpu_custom_call.1} parent=1 // loop_exit
      _
    %549 = vsyncpa [#allocation4], 1
    %s550 = scalar_lea.sflag [#allocation4], 1
    %551 = vsyncpa %s550, 1

</llo_original>
